<compile_context>
chip_gen: v5e
topology: v5e:2x2
jax: 0.10.0
libtpu: 0.0.40
codegen_flags: <defaults>
</compile_context>

<pallas_src>
import functools

import jax
import jax.numpy as jnp
from jax import lax
from jax.experimental import pallas as pl
from jax.experimental.pallas import tpu as pltpu


def _flash_sdpa_kernel(q_ref, k_ref, v_ref, o_ref, m_ref, l_ref, acc_ref, *,
                       scale, precision):
    """One (batch, q-tile, kv-tile) grid step.

    Refs (batch dim squeezed away by the BlockSpecs):
      q_ref: (tq, D)   k_ref: (tk, D)   v_ref: (tk, Dv)   o_ref: (tq, Dv)
    Scratch (f32, resident across the kv axis):
      m_ref: (tq, 1) running max, l_ref: (tq, 1) running denom, acc_ref: (tq, Dv)
    """
    ki = pl.program_id(2)

    @pl.when(ki == 0)
    def _init():
        m_ref[...] = jnp.full_like(m_ref, -jnp.inf)
        l_ref[...] = jnp.zeros_like(l_ref)
        acc_ref[...] = jnp.zeros_like(acc_ref)

    q = q_ref[...]
    if scale:  # matches the torch module's `if scale:` (None / 0.0 -> no scaling)
        # Fold the scale into Q (tq*D elements) instead of the (tq, tk) scores.
        q = q * scale

    # QK^T without an explicit transpose: contract the feature (last) axes so the
    # K tile is consumed row-major by the MXU; accumulate in f32.
    s = lax.dot_general(
        q, k_ref[...],
        dimension_numbers=(((1,), (1,)), ((), ())),
        preferred_element_type=jnp.float32,
        precision=precision,
    )  # (tq, tk) f32

    # Online (flash) softmax update.
    m_prev = m_ref[...]
    m_new = jnp.maximum(m_prev, jnp.max(s, axis=-1, keepdims=True))
    alpha = jnp.exp(m_prev - m_new)
    p = jnp.exp(s - m_new)
    l_ref[...] = alpha * l_ref[...] + jnp.sum(p, axis=-1, keepdims=True)
    acc_ref[...] = alpha * acc_ref[...] + jnp.dot(
        p.astype(v_ref.dtype), v_ref[...],
        preferred_element_type=jnp.float32, precision=precision)
    m_ref[...] = m_new

    @pl.when(ki == pl.num_programs(2) - 1)
    def _finalize():
        # Exact reciprocal: one divide on a (tq, 1) f32 vector, then a broadcast
        # multiply.  (The approximate EUP reciprocal cost ~1e-3 relative error, which
        # is what broke the unscaled-softmax check.)
        inv_l = 1.0 / l_ref[...]
        o_ref[...] = (acc_ref[...] * inv_l).astype(o_ref.dtype)


def _choose_tile(dim, target, preferred_align=128):
    """Largest tile <= target that evenly divides `dim`.

    Prefers lane/MXU-friendly multiples of `preferred_align`, then sublane multiples
    of 8, then the full extent (always a legal block shape).
    """
    if dim <= target:
        return dim
    for align in (preferred_align, 8):
        t = (target // align) * align
        while t >= align:
            if dim % t == 0:
                return t
            t -= align
    return dim


def scaled_dot_product_attention(Q, K, V, scale=None, *, block_q=256, block_k=256,
                                 precision=lax.Precision.HIGHEST):
    """Pallas equivalent of Scaled_Dot_Product_Attention.forward (returns context).

    `precision` defaults to HIGHEST so f32 inputs get a true f32 matmul (torch
    semantics); for bf16 inputs the flag is effectively free on the MXU.
    """
    B, Lq, D = Q.shape
    Bk, Lk, Dk = K.shape
    Bv, Lv, Dv = V.shape
    assert B == Bk == Bv and D == Dk and Lk == Lv, "Q/K dim and K/V length must match"

    tq = _choose_tile(Lq, block_q)
    tk = _choose_tile(Lk, block_k)
    grid = (B, Lq // tq, Lk // tk)

    kernel = functools.partial(_flash_sdpa_kernel, scale=scale, precision=precision)

    return pl.pallas_call(
        kernel,
        out_shape=jax.ShapeDtypeStruct((B, Lq, Dv), Q.dtype),
        grid_spec=pltpu.PrefetchScalarGridSpec(
            num_scalar_prefetch=0,
            grid=grid,
            in_specs=[
                # Leading batch dim squeezed (None) so kernel refs are 2-D tiles.
                pl.BlockSpec((None, tq, D), lambda b, qi, ki: (b, qi, 0)),
                pl.BlockSpec((None, tk, D), lambda b, qi, ki: (b, ki, 0)),
                pl.BlockSpec((None, tk, Dv), lambda b, qi, ki: (b, ki, 0)),
            ],
            # Same output block across the kv axis -> resident accumulator pattern.
            out_specs=pl.BlockSpec((None, tq, Dv), lambda b, qi, ki: (b, qi, 0)),
            scratch_shapes=[
                pltpu.VMEM((tq, 1), jnp.float32),   # running max m
                pltpu.VMEM((tq, 1), jnp.float32),   # running denom l
                pltpu.VMEM((tq, Dv), jnp.float32),  # f32 output accumulator
            ],
        ),
        compiler_params=pltpu.CompilerParams(
            # batch / q-tile axes shard across TensorCores (megacore); the kv
            # reduction axis must stay "arbitrary" (resident accumulator).
            dimension_semantics=("parallel", "parallel", "arbitrary"),
            # Explicit scoped-VMEM budget with headroom; safe on v5e/v6e (128 MiB
            # physical) and v7x (64 MiB physical).
            vmem_limit_bytes=32 * 1024 * 1024,
        ),
    )(Q, K, V)


def _reference(Q, K, V, scale=None):
    # Pure-JAX reference mirroring the PyTorch forward (including `if scale:`),
    # computed at full f32 matmul precision to match torch.matmul on f32.
    attn = jnp.einsum("bqd,bkd->bqk", Q, K, precision=lax.Precision.HIGHEST)
    if scale:
        attn = attn * scale
    attn = jax.nn.softmax(attn, axis=-1)
    return jnp.einsum("bqk,bkd->bqd", attn, V, precision=lax.Precision.HIGHEST)


if __name__ == "__main__":
    key = jax.random.PRNGKey(0)
    kq, kk, kv = jax.random.split(key, 3)

    # Small shapes consistent with the module: [batch, seq, hidden].
    B, L, D, Dv = 2, 8, 32, 32
    Q = jax.random.normal(kq, (B, L, D), dtype=jnp.float32)
    K = jax.random.normal(kk, (B, L, D), dtype=jnp.float32)
    V = jax.random.normal(kv, (B, L, Dv), dtype=jnp.float32)
    scale = 1.0 / (D ** 0.5)

    # With scale (paper convention) and without, matching the module's `if scale:`.
    out = scaled_dot_product_attention(Q, K, V, scale=scale)
    out_noscale = scaled_dot_product_attention(Q, K, V, scale=None)
    jax.block_until_ready((out, out_noscale))

    ref = _reference(Q, K, V, scale=scale)
    ref_noscale = _reference(Q, K, V, scale=None)

    assert jnp.allclose(out, ref, atol=2e-3, rtol=2e-3)
    assert jnp.allclose(out_noscale, ref_noscale, atol=2e-3, rtol=2e-3)

    # Exercise the tiled / online-softmax path: multiple kv tiles per q tile.
    B2, L2 = 2, 16
    Q2 = jax.random.normal(kq, (B2, L2, D), dtype=jnp.float32)
    K2 = jax.random.normal(kk, (B2, L2, D), dtype=jnp.float32)
    V2 = jax.random.normal(kv, (B2, L2, Dv), dtype=jnp.float32)
    out2 = scaled_dot_product_attention(Q2, K2, V2, scale=scale, block_q=8, block_k=8)
    jax.block_until_ready(out2)
    ref2 = _reference(Q2, K2, V2, scale=scale)
    assert jnp.allclose(out2, ref2, atol=2e-3, rtol=2e-3)

    print("KERNEL_OK")
</pallas_src>

<mosaic_0001>
module attributes {stable_mosaic.version = 11 : i64} {
  func.func @_flash_sdpa_kernel(%arg0: i32, %arg1: i32, %arg2: i32, %arg3: memref<1x8x32xf32, #tpu.memory_space<vmem>>, %arg4: memref<1x8x32xf32, #tpu.memory_space<vmem>>, %arg5: memref<1x8x32xf32, #tpu.memory_space<vmem>>, %arg6: memref<1x8x32xf32, #tpu.memory_space<vmem>>, %arg7: memref<8x1xf32, #tpu.memory_space<vmem>>, %arg8: memref<8x1xf32, #tpu.memory_space<vmem>>, %arg9: memref<8x32xf32, #tpu.memory_space<vmem>>) attributes {dimension_semantics = [#tpu.dimension_semantics<parallel>, #tpu.dimension_semantics<parallel>, #tpu.dimension_semantics<arbitrary>], iteration_bounds = array<i64: 2, 1, 1>, scalar_prefetch = 0 : i64, scratch_operands = 3 : i64, tpu.core_type = #tpu.core_type<tc>, window_params = [{transform_indices = @transform_0, window_bounds = array<i64: 1, 8, 32>}, {transform_indices = @transform_1, window_bounds = array<i64: 1, 8, 32>}, {transform_indices = @transform_2, window_bounds = array<i64: 1, 8, 32>}, {transform_indices = @transform_3, window_bounds = array<i64: 1, 8, 32>}]} {
    %c0_i32 = arith.constant 0 : i32
    %0 = arith.cmpi eq, %arg2, %c0_i32 : i32
    %1 = arith.extui %0 : i1 to i32
    %c0_i32_0 = arith.constant 0 : i32
    %2 = arith.cmpi ne, %1, %c0_i32_0 : i32
    scf.if %2 {
      %cst_27 = arith.constant 0xFF800000 : f32
      %37 = vector.broadcast %cst_27 : f32 to vector<8x1xf32>
      %c0_28 = arith.constant 0 : index
      %c0_29 = arith.constant 0 : index
      %38 = vector.load %arg7[%c0_28, %c0_29] : memref<8x1xf32, #tpu.memory_space<vmem>>, vector<8x1xf32>
      tpu.vector_store %arg7[%c0_28, %c0_29], %37 {strides = array<i32>} : memref<8x1xf32, #tpu.memory_space<vmem>>, vector<8x1xf32>,
      %cst_30 = arith.constant 0.000000e+00 : f32
      %39 = vector.broadcast %cst_30 : f32 to vector<8x1xf32>
      %c0_31 = arith.constant 0 : index
      %c0_32 = arith.constant 0 : index
      %40 = vector.load %arg8[%c0_31, %c0_32] : memref<8x1xf32, #tpu.memory_space<vmem>>, vector<8x1xf32>
      tpu.vector_store %arg8[%c0_31, %c0_32], %39 {strides = array<i32>} : memref<8x1xf32, #tpu.memory_space<vmem>>, vector<8x1xf32>,
      %cst_33 = arith.constant 0.000000e+00 : f32
      %41 = vector.broadcast %cst_33 : f32 to vector<8x32xf32>
      %c0_34 = arith.constant 0 : index
      %c0_35 = arith.constant 0 : index
      %42 = vector.load %arg9[%c0_34, %c0_35] : memref<8x32xf32, #tpu.memory_space<vmem>>, vector<8x32xf32>
      tpu.vector_store %arg9[%c0_34, %c0_35], %41 {strides = array<i32>} : memref<8x32xf32, #tpu.memory_space<vmem>>, vector<8x32xf32>,
    } else {
    }
    %c0 = arith.constant 0 : index
    %c0_1 = arith.constant 0 : index
    %c0_2 = arith.constant 0 : index
    %3 = vector.load %arg3[%c0, %c0_1, %c0_2] : memref<1x8x32xf32, #tpu.memory_space<vmem>>, vector<1x8x32xf32>
    %4 = vector.shape_cast %3 : vector<1x8x32xf32> to vector<8x32xf32>
    %cst = arith.constant 0.176776692 : f32
    %5 = vector.broadcast %cst : f32 to vector<8x32xf32>
    %6 = arith.mulf %4, %5 : vector<8x32xf32>
    %c0_3 = arith.constant 0 : index
    %c0_4 = arith.constant 0 : index
    %c0_5 = arith.constant 0 : index
    %7 = vector.load %arg4[%c0_3, %c0_4, %c0_5] : memref<1x8x32xf32, #tpu.memory_space<vmem>>, vector<1x8x32xf32>
    %8 = vector.shape_cast %7 : vector<1x8x32xf32> to vector<8x32xf32>
    %cst_6 = arith.constant dense<0.000000e+00> : vector<8x8xf32>
    %9 = tpu.matmul %6, %8, %cst_6 {dimension_numbers = #tpu.dot_dimension_numbers<[1], [1], [0], [0], [0, 0, 1, 0], [], []>, precision = #tpu.contract_precision<fp32>} : vector<8x32xf32>, vector<8x32xf32>, vector<8x8xf32> -> vector<8x8xf32>
    %c0_7 = arith.constant 0 : index
    %c0_8 = arith.constant 0 : index
    %10 = vector.load %arg7[%c0_7, %c0_8] : memref<8x1xf32, #tpu.memory_space<vmem>>, vector<8x1xf32>
    %cst_9 = arith.constant dense<0xFF800000> : vector<8xf32>
    %11 = vector.multi_reduction <maximumf>, %9, %cst_9 [1] : vector<8x8xf32> to vector<8xf32>
    %12 = vector.shape_cast %11 : vector<8xf32> to vector<8x1xf32>
    %13 = arith.maximumf %10, %12 : vector<8x1xf32>
    %14 = arith.subf %10, %13 : vector<8x1xf32>
    %15 = math.exp %14 : vector<8x1xf32>
    %16 = vector.broadcast %13 : vector<8x1xf32> to vector<8x8xf32>
    %17 = arith.subf %9, %16 : vector<8x8xf32>
    %18 = math.exp %17 : vector<8x8xf32>
    %c0_10 = arith.constant 0 : index
    %c0_11 = arith.constant 0 : index
    %19 = vector.load %arg8[%c0_10, %c0_11] : memref<8x1xf32, #tpu.memory_space<vmem>>, vector<8x1xf32>
    %20 = arith.mulf %15, %19 : vector<8x1xf32>
    %cst_12 = arith.constant dense<0.000000e+00> : vector<8xf32>
    %21 = vector.multi_reduction <add>, %18, %cst_12 [1] : vector<8x8xf32> to vector<8xf32>
    %22 = vector.shape_cast %21 : vector<8xf32> to vector<8x1xf32>
    %23 = arith.addf %20, %22 : vector<8x1xf32>
    %c0_13 = arith.constant 0 : index
    %c0_14 = arith.constant 0 : index
    %24 = vector.load %arg8[%c0_13, %c0_14] : memref<8x1xf32, #tpu.memory_space<vmem>>, vector<8x1xf32>
    tpu.vector_store %arg8[%c0_13, %c0_14], %23 {strides = array<i32>} : memref<8x1xf32, #tpu.memory_space<vmem>>, vector<8x1xf32>,
    %c0_15 = arith.constant 0 : index
    %c0_16 = arith.constant 0 : index
    %25 = vector.load %arg9[%c0_15, %c0_16] : memref<8x32xf32, #tpu.memory_space<vmem>>, vector<8x32xf32>
    %26 = vector.broadcast %15 : vector<8x1xf32> to vector<8x32xf32>
    %27 = arith.mulf %26, %25 : vector<8x32xf32>
    %c0_17 = arith.constant 0 : index
    %c0_18 = arith.constant 0 : index
    %c0_19 = arith.constant 0 : index
    %28 = vector.load %arg5[%c0_17, %c0_18, %c0_19] : memref<1x8x32xf32, #tpu.memory_space<vmem>>, vector<1x8x32xf32>
    %29 = vector.shape_cast %28 : vector<1x8x32xf32> to vector<8x32xf32>
    %cst_20 = arith.constant dense<0.000000e+00> : vector<8x32xf32>
    %30 = tpu.matmul %18, %29, %cst_20 {dimension_numbers = #tpu.dot_dimension_numbers<[1], [0], [0], [1], [0, 0, 1, 1], [], []>, precision = #tpu.contract_precision<fp32>} : vector<8x8xf32>, vector<8x32xf32>, vector<8x32xf32> -> vector<8x32xf32>
    %31 = arith.addf %27, %30 : vector<8x32xf32>
    %c0_21 = arith.constant 0 : index
    %c0_22 = arith.constant 0 : index
    %32 = vector.load %arg9[%c0_21, %c0_22] : memref<8x32xf32, #tpu.memory_space<vmem>>, vector<8x32xf32>
    tpu.vector_store %arg9[%c0_21, %c0_22], %31 {strides = array<i32>} : memref<8x32xf32, #tpu.memory_space<vmem>>, vector<8x32xf32>,
    %c0_23 = arith.constant 0 : index
    %c0_24 = arith.constant 0 : index
    %33 = vector.load %arg7[%c0_23, %c0_24] : memref<8x1xf32, #tpu.memory_space<vmem>>, vector<8x1xf32>
    tpu.vector_store %arg7[%c0_23, %c0_24], %13 {strides = array<i32>} : memref<8x1xf32, #tpu.memory_space<vmem>>, vector<8x1xf32>,
    %c0_i32_25 = arith.constant 0 : i32
    %34 = arith.cmpi eq, %arg2, %c0_i32_25 : i32
    %35 = arith.extui %34 : i1 to i32
    %c0_i32_26 = arith.constant 0 : i32
    %36 = arith.cmpi ne, %35, %c0_i32_26 : i32
    scf.if %36 {
      %c0_27 = arith.constant 0 : index
      %c0_28 = arith.constant 0 : index
      %37 = vector.load %arg8[%c0_27, %c0_28] : memref<8x1xf32, #tpu.memory_space<vmem>>, vector<8x1xf32>
      %cst_29 = arith.constant 1.000000e+00 : f32
      %38 = vector.broadcast %cst_29 : f32 to vector<8x1xf32>
      %39 = arith.divf %38, %37 : vector<8x1xf32>
      %c0_30 = arith.constant 0 : index
      %c0_31 = arith.constant 0 : index
      %40 = vector.load %arg9[%c0_30, %c0_31] : memref<8x32xf32, #tpu.memory_space<vmem>>, vector<8x32xf32>
      %41 = vector.broadcast %39 : vector<8x1xf32> to vector<8x32xf32>
      %42 = arith.mulf %40, %41 : vector<8x32xf32>
      %c0_32 = arith.constant 0 : index
      %c0_33 = arith.constant 0 : index
      %c0_34 = arith.constant 0 : index
      %43 = vector.load %arg6[%c0_32, %c0_33, %c0_34] : memref<1x8x32xf32, #tpu.memory_space<vmem>>, vector<1x8x32xf32>
      %44 = vector.shape_cast %43 : vector<1x8x32xf32> to vector<8x32xf32>
      %45 = vector.shape_cast %42 : vector<8x32xf32> to vector<1x8x32xf32>
      tpu.vector_store %arg6[%c0_32, %c0_33, %c0_34], %45 {strides = array<i32>} : memref<1x8x32xf32, #tpu.memory_space<vmem>>, vector<1x8x32xf32>,
    } else {
    }
    return
  }
  func.func @transform_0(%arg0: i32, %arg1: i32, %arg2: i32) -> (i32, i32, i32) {
    %c0_i32 = arith.constant 0 : i32
    %c0_i32_0 = arith.constant 0 : i32
    return %arg0, %arg1, %c0_i32 : i32, i32, i32
  }
  func.func @transform_1(%arg0: i32, %arg1: i32, %arg2: i32) -> (i32, i32, i32) {
    %c0_i32 = arith.constant 0 : i32
    %c0_i32_0 = arith.constant 0 : i32
    return %arg0, %arg2, %c0_i32 : i32, i32, i32
  }
  func.func @transform_2(%arg0: i32, %arg1: i32, %arg2: i32) -> (i32, i32, i32) {
    %c0_i32 = arith.constant 0 : i32
    %c0_i32_0 = arith.constant 0 : i32
    return %arg0, %arg2, %c0_i32 : i32, i32, i32
  }
  func.func @transform_3(%arg0: i32, %arg1: i32, %arg2: i32) -> (i32, i32, i32) {
    %c0_i32 = arith.constant 0 : i32
    %c0_i32_0 = arith.constant 0 : i32
    return %arg0, %arg1, %c0_i32 : i32, i32, i32
  }
}

</mosaic_0001>

<llo_original>
// kernel: tpu_custom_call.1
$region0: #{tpu_custom_call.1}
  #allocation0 [shape = 'u32[]', space=smem, size = 0x4, offset = 0x4, fixed_abs, tag = 'smem constant byte address 0x4 - core index']
  #allocation1 [shape = 'u32[72,128]{1,0:T(1,128)}', space=vmem, size = 0x9000, scoped, tag = 'internal scratch']
  #allocation2 [shape = 'f32[8,1]{1,0:T(8,128)}', space=vmem, size = 0x1000, scoped, tag = 'scratch operand']
  #allocation3 [shape = 'f32[8,1]{1,0:T(8,128)}', space=vmem, size = 0x1000, scoped, tag = 'scratch operand']
  #allocation4 [shape = 'f32[8,32]{1,0:T(8,128)}', space=vmem, size = 0x1000, scoped, tag = 'scratch operand']
  %s0 = inlined_call_operand.hbm [shape: f32[2,8,32], index: 0, kind: input, shape index: {}]
  %s1 = inlined_call_operand.hbm [shape: f32[2,8,32], index: 1, kind: input, shape index: {}]
  %s2 = inlined_call_operand.hbm [shape: f32[2,8,32], index: 2, kind: input, shape index: {}]
  %s3 = inlined_call_operand.hbm [shape: f32[2,8,32], index: 3, kind: output, shape index: {}]
  %s4 = sld [smem:[#allocation0]]
  $region65: #{tpu_custom_call.1} parent=0
    _
  %s6 = ssub.s32 1, %s4
  %s7 = scalar_select 0, %s6, %s4
  $region1: #{tpu_custom_call.1} parent=0
    #allocation5 [shape = 'u8[8192]{0}', space=vmem, size = 0x2000, scoped, tag = 'input window, operand 0']
    #allocation6 [shape = 's32[2]{0}', space=sflag, size = 0x8, scoped, tag = 'scoped memory for tpu_custom_call.1']
    #allocation7 [shape = 's32[2]{0}', space=sflag, size = 0x8, scoped, tag = 'scoped memory for tpu_custom_call.1']
    #allocation8 [shape = 'u8[8192]{0}', space=vmem, size = 0x2000, scoped, tag = 'input window, operand 1']
    #allocation9 [shape = 's32[2]{0}', space=sflag, size = 0x8, scoped, tag = 'scoped memory for tpu_custom_call.1']
    #allocation10 [shape = 'u8[8192]{0}', space=vmem, size = 0x2000, scoped, tag = 'input window, operand 2']
    #allocation11 [shape = 'u8[8192]{0}', space=vmem, size = 0x2000, scoped, tag = 'output window, operand 0']
    %8 = vsyncpa [#allocation6], 0
    %s9 = scalar_lea.sflag [#allocation6], 1
    %10 = vsyncpa %s9, 0
    %11 = vsyncpa [#allocation9], 0
    %s12 = scalar_lea.sflag [#allocation9], 1
    %13 = vsyncpa %s12, 0
    %14 = vsyncpa [#allocation7], 0
    %s15 = scalar_lea.sflag [#allocation7], 1
    %16 = vsyncpa %s15, 0
    loop: start=0, step=1, limit=4
    $region2: #{tpu_custom_call.1} parent=1 // loop_pre_header
      _
    $region3: #{tpu_custom_call.1} parent=1 // loop_header
      %s18 = sphi 0, %s22
      %p19 = scmp.ge.s32.totalorder %s18, 4
      %s25 = sphi 0, %s44
      %s26 = sphi 0, %s40
      %s27 = sphi 0, %s36
      %s28 = sphi 0, %s25
      %s29 = sphi 0, %s26
      %s30 = sphi 0, %s27
      %s31 = sphi 0, %s28
      %s32 = sphi 0, %s29
      %s33 = sphi 0, %s30
      %s49 = sphi 0, %s51
      %s52 = sphi 0, %s49
      %s53 = sphi 0, %s52
      %s69 = sphi 0, %s53
      %s77 = sphi 0, %s79
      %s80 = sphi 0, %s77
      %s81 = sphi 0, %s80
      %s97 = sphi 0, %s81
      %s105 = sphi 0, %s107
      %s108 = sphi 0, %s105
      %s109 = sphi 0, %s108
      %s125 = sphi 0, %s109
      %s133 = sphi 0, %s135
      %s136 = sphi 0, %s133
      %s137 = sphi 0, %s136
      %s153 = sphi 0, %s137
    $region4: #{tpu_custom_call.1} parent=1 // loop_header_branch
      %21 = sbr.rel (%p19) target = $region8
    $region5: #{tpu_custom_call.1} parent=1 // loop_body
      %s23 = ssub.s32 %s18, 1
      %s24 = ssub.s32 %s18, 2
      %s34 = sadd.s32 1, %s27
      %p35 = scmp.ge.s32.totalorder %s34, 1
      %s36 = scalar_select %p35, 0, %s34
      %s37 = sadd.s32 1, %s26
      %s38 = scalar_select %p35, %s37, %s26
      %p39 = scmp.ge.s32.totalorder %s38, 1
      %s40 = scalar_select %p39, 0, %s38
      %s41 = sadd.s32 1, %s25
      %s42 = scalar_select %p39, %s41, %s25
      %p43 = scmp.ge.s32.totalorder %s42, 2
      %s44 = scalar_select %p43, 0, %s42
      %s45 = ssub.s32 %s25, %s44
      %s46 = ssub.s32 %s26, %s40
      %s47 = sor.u32 %s45, %s46
      %p48 = scmp.eq.s32.totalorder %s47, 0
      %s50 = sadd.s32 %s49, 1
      %s51 = scalar_select %p48, %s49, %s50
      %p54 = pneg %p48
      %p55 = scmp.eq.s32.totalorder %s18, 1
      %p56 = por %p54, %p55
      %p57 = scmp.ne.s32.totalorder %s49, %s52
      %p58 = scmp.eq.s32.totalorder %s18, 0
      %p59 = por %p57, %p58
      %p60 = scmp.ne.s32.totalorder %s49, %s52
      %p61 = scmp.eq.s32.totalorder %s23, 1
      %p62 = por %p60, %p61
      %p63 = scmp.ne.s32.totalorder %s52, %s53
      %p64 = scmp.eq.s32.totalorder %s23, 0
      %p65 = por %p63, %p64
      %p66 = scmp.ne.s32.totalorder %s52, %s53
      %p67 = scmp.eq.s32.totalorder %s24, 1
      %p68 = por %p66, %p67
      %p70 = scmp.ne.s32.totalorder %s53, %s69
      %p71 = scmp.eq.s32.totalorder %s24, 0
      %p72 = por %p70, %p71
      %s73 = ssub.s32 %s25, %s44
      %s74 = ssub.s32 %s27, %s36
      %s75 = sor.u32 %s73, %s74
      %p76 = scmp.eq.s32.totalorder %s75, 0
      %s78 = sadd.s32 %s77, 1
      %s79 = scalar_select %p76, %s77, %s78
      %p82 = pneg %p76
      %p83 = scmp.eq.s32.totalorder %s18, 1
      %p84 = por %p82, %p83
      %p85 = scmp.ne.s32.totalorder %s77, %s80
      %p86 = scmp.eq.s32.totalorder %s18, 0
      %p87 = por %p85, %p86
      %p88 = scmp.ne.s32.totalorder %s77, %s80
      %p89 = scmp.eq.s32.totalorder %s23, 1
      %p90 = por %p88, %p89
      %p91 = scmp.ne.s32.totalorder %s80, %s81
      %p92 = scmp.eq.s32.totalorder %s23, 0
      %p93 = por %p91, %p92
      %p94 = scmp.ne.s32.totalorder %s80, %s81
      %p95 = scmp.eq.s32.totalorder %s24, 1
      %p96 = por %p94, %p95
      %p98 = scmp.ne.s32.totalorder %s81, %s97
      %p99 = scmp.eq.s32.totalorder %s24, 0
      %p100 = por %p98, %p99
      %s101 = ssub.s32 %s25, %s44
      %s102 = ssub.s32 %s27, %s36
      %s103 = sor.u32 %s101, %s102
      %p104 = scmp.eq.s32.totalorder %s103, 0
      %s106 = sadd.s32 %s105, 1
      %s107 = scalar_select %p104, %s105, %s106
      %p110 = pneg %p104
      %p111 = scmp.eq.s32.totalorder %s18, 1
      %p112 = por %p110, %p111
      %p113 = scmp.ne.s32.totalorder %s105, %s108
      %p114 = scmp.eq.s32.totalorder %s18, 0
      %p115 = por %p113, %p114
      %p116 = scmp.ne.s32.totalorder %s105, %s108
      %p117 = scmp.eq.s32.totalorder %s23, 1
      %p118 = por %p116, %p117
      %p119 = scmp.ne.s32.totalorder %s108, %s109
      %p120 = scmp.eq.s32.totalorder %s23, 0
      %p121 = por %p119, %p120
      %p122 = scmp.ne.s32.totalorder %s108, %s109
      %p123 = scmp.eq.s32.totalorder %s24, 1
      %p124 = por %p122, %p123
      %p126 = scmp.ne.s32.totalorder %s109, %s125
      %p127 = scmp.eq.s32.totalorder %s24, 0
      %p128 = por %p126, %p127
      %s129 = ssub.s32 %s25, %s44
      %s130 = ssub.s32 %s26, %s40
      %s131 = sor.u32 %s129, %s130
      %p132 = scmp.eq.s32.totalorder %s131, 0
      %s134 = sadd.s32 %s133, 1
      %s135 = scalar_select %p132, %s133, %s134
      %p138 = pneg %p132
      %p139 = scmp.eq.s32.totalorder %s18, 1
      %p140 = por %p138, %p139
      %p141 = scmp.ne.s32.totalorder %s133, %s136
      %p142 = scmp.eq.s32.totalorder %s18, 0
      %p143 = por %p141, %p142
      %p144 = scmp.ne.s32.totalorder %s133, %s136
      %p145 = scmp.eq.s32.totalorder %s23, 1
      %p146 = por %p144, %p145
      %p147 = scmp.ne.s32.totalorder %s136, %s137
      %p148 = scmp.eq.s32.totalorder %s23, 0
      %p149 = por %p147, %p148
      %p150 = scmp.ne.s32.totalorder %s136, %s137
      %p151 = scmp.eq.s32.totalorder %s24, 1
      %p152 = por %p150, %p151
      %p154 = scmp.ne.s32.totalorder %s137, %s153
      %p155 = scmp.eq.s32.totalorder %s24, 0
      %p156 = por %p154, %p155
      %p157 = scmp.le.s32.totalorder 1, %s18
      %p158 = scmp.lt.s32.totalorder %s18, 3
      %p159 = pnand %p157, %p158
      %p160 = pneg %p159
      // Predicated region
      $region9: #{tpu_custom_call.1} parent=5 // pred_check
        _
      $region10: #{tpu_custom_call.1} parent=5 // pred_check_branch
        %162 = sbr.rel (%p159) target = $region12
      $region11: #{tpu_custom_call.1} parent=5 // pred_region
        %s163 = ssub.s32 %s18, 1
      $region12: #{tpu_custom_call.1} parent=5 // pred_fallthru
        _
      %p164 = scmp.lt.s32.totalorder %s18, 2
      // Predicated region
      $region13: #{tpu_custom_call.1} parent=5 // pred_check
        %p165 = pneg %p164
      $region14: #{tpu_custom_call.1} parent=5 // pred_check_branch
        %167 = sbr.rel (%p165) target = $region16
      $region15: #{tpu_custom_call.1} parent=5 // pred_region
        // Predicated region
        $region17: #{tpu_custom_call.1} parent=15 // pred_check
          %p168 = pneg %p59
        $region18: #{tpu_custom_call.1} parent=15 // pred_check_branch
          %170 = sbr.rel (%p168) target = $region20
        $region19: #{tpu_custom_call.1} parent=15 // pred_region
          %s171 = sand.u32 %s49, 1
          %s172 = scalar_lea.sflag [#allocation6], %s171
          %s173 = sand.u32 %s49, 1
          %s174 = smul.addr %s173, 8
          %s175 = scalar_lea.vmem [#allocation5], %s174
          %177 = vsyncadd %s172, 0
          %s178 = sadd.s32 %s26, %s25
          %s179 = smul.addr %s178, 8
          %s180 = scalar_lea.hbm %s0, %s179
          %s182 = sshll.u32 %s180, 4
          %s183 = int_to_ptr.hbm [resolvable:$true] %s182
          %s184 = sshll.u32 %s175, 4
          %s185 = int_to_ptr.vmem [resolvable:$true] %s184
          %187 = dma.hbm_to_vmem [thread:$0]  %s183, 128, %s185, %s172
        $region20: #{tpu_custom_call.1} parent=15 // pred_fallthru
          _
        // Predicated region
        $region21: #{tpu_custom_call.1} parent=15 // pred_check
          %p188 = pneg %p87
        $region22: #{tpu_custom_call.1} parent=15 // pred_check_branch
          %190 = sbr.rel (%p188) target = $region24
        $region23: #{tpu_custom_call.1} parent=15 // pred_region
          %s191 = sand.u32 %s18, 1
          %s192 = scalar_lea.sflag [#allocation9], %s191
          %s193 = sand.u32 %s77, 1
          %s194 = smul.addr %s193, 8
          %s195 = scalar_lea.vmem [#allocation8], %s194
          %197 = vsyncadd %s192, 0
          %s198 = sadd.s32 %s27, %s25
          %s199 = smul.addr %s198, 8
          %s200 = scalar_lea.hbm %s1, %s199
          %s202 = sshll.u32 %s200, 4
          %s203 = int_to_ptr.hbm [resolvable:$true] %s202
          %s204 = sshll.u32 %s195, 4
          %s205 = int_to_ptr.vmem [resolvable:$true] %s204
          %207 = dma.hbm_to_vmem [thread:$0]  %s203, 128, %s205, %s192
        $region24: #{tpu_custom_call.1} parent=15 // pred_fallthru
          _
        // Predicated region
        $region25: #{tpu_custom_call.1} parent=15 // pred_check
          %p208 = pneg %p115
        $region26: #{tpu_custom_call.1} parent=15 // pred_check_branch
          %210 = sbr.rel (%p208) target = $region28
        $region27: #{tpu_custom_call.1} parent=15 // pred_region
          %s211 = sand.u32 %s18, 1
          %s212 = scalar_lea.sflag [#allocation9], %s211
          %s213 = sand.u32 %s105, 1
          %s214 = smul.addr %s213, 8
          %s215 = scalar_lea.vmem [#allocation10], %s214
          %217 = vsyncadd %s212, 0
          %s218 = sadd.s32 %s27, %s25
          %s219 = smul.addr %s218, 8
          %s220 = scalar_lea.hbm %s2, %s219
          %s222 = sshll.u32 %s220, 4
          %s223 = int_to_ptr.hbm [resolvable:$true] %s222
          %s224 = sshll.u32 %s215, 4
          %s225 = int_to_ptr.vmem [resolvable:$true] %s224
          %227 = dma.hbm_to_vmem [thread:$0]  %s223, 128, %s225, %s212
        $region28: #{tpu_custom_call.1} parent=15 // pred_fallthru
          _
      $region16: #{tpu_custom_call.1} parent=5 // pred_fallthru
        _
      %p228 = scmp.le.s32.totalorder 1, %s18
      %p229 = scmp.lt.s32.totalorder %s18, 3
      %p230 = pnand %p228, %p229
      %p231 = pneg %p230
      // Predicated region
      $region29: #{tpu_custom_call.1} parent=5 // pred_check
        _
      $region30: #{tpu_custom_call.1} parent=5 // pred_check_branch
        %233 = sbr.rel (%p230) target = $region32
      $region31: #{tpu_custom_call.1} parent=5 // pred_region
        %s234 = ssub.s32 %s18, 1
        %s235 = sand.u32 %s52, 1
        %s236 = scalar_lea.sflag [#allocation6], %s235
        %s237 = sand.u32 %s52, 1
        %s238 = smul.addr %s237, 8
        %s239 = scalar_lea.vmem [#allocation5], %s238
        // Predicated region
        $region33: #{tpu_custom_call.1} parent=31 // pred_check
          %p240 = pneg %p65
        $region34: #{tpu_custom_call.1} parent=31 // pred_check_branch
          %242 = sbr.rel (%p240) target = $region36
        $region35: #{tpu_custom_call.1} parent=31 // pred_region
          %244 = dma.done %s236, 128
        $region36: #{tpu_custom_call.1} parent=31 // pred_fallthru
          _
        %s245 = sand.u32 %s23, 1
        %s246 = scalar_lea.sflag [#allocation9], %s245
        %s247 = sand.u32 %s80, 1
        %s248 = smul.addr %s247, 8
        %s249 = scalar_lea.vmem [#allocation8], %s248
        // Predicated region
        $region37: #{tpu_custom_call.1} parent=31 // pred_check
          %p250 = pneg %p93
        $region38: #{tpu_custom_call.1} parent=31 // pred_check_branch
          %252 = sbr.rel (%p250) target = $region40
        $region39: #{tpu_custom_call.1} parent=31 // pred_region
          %254 = dma.done %s246, 128
        $region40: #{tpu_custom_call.1} parent=31 // pred_fallthru
          _
        %s255 = sand.u32 %s23, 1
        %s256 = scalar_lea.sflag [#allocation9], %s255
        %s257 = sand.u32 %s108, 1
        %s258 = smul.addr %s257, 8
        %s259 = scalar_lea.vmem [#allocation10], %s258
        // Predicated region
        $region41: #{tpu_custom_call.1} parent=31 // pred_check
          %p260 = pneg %p121
        $region42: #{tpu_custom_call.1} parent=31 // pred_check_branch
          %262 = sbr.rel (%p260) target = $region44
        $region43: #{tpu_custom_call.1} parent=31 // pred_region
          %264 = dma.done %s256, 128
        $region44: #{tpu_custom_call.1} parent=31 // pred_fallthru
          _
        %s265 = sand.u32 %s52, 1
        %s266 = scalar_lea.sflag [#allocation6], %s265
        %s267 = sand.u32 %s52, 1
        %s268 = smul.addr %s267, 8
        %s269 = scalar_lea.vmem [#allocation5], %s268
        %p270 = pneg %p65
        %p271 = pneg %p62
        %s272 = sand.u32 %s23, 1
        %s273 = scalar_lea.sflag [#allocation9], %s272
        %s274 = sand.u32 %s80, 1
        %s275 = smul.addr %s274, 8
        %s276 = scalar_lea.vmem [#allocation8], %s275
        %p277 = pneg %p93
        %p278 = pneg %p90
        %s279 = sand.u32 %s23, 1
        %s280 = scalar_lea.sflag [#allocation9], %s279
        %s281 = sand.u32 %s108, 1
        %s282 = smul.addr %s281, 8
        %s283 = scalar_lea.vmem [#allocation10], %s282
        %p284 = pneg %p121
        %p285 = pneg %p118
        %p286 = pneg %p149
        %p287 = pneg %p146
        %s288 = sand.u32 %s136, 1
        %s289 = scalar_lea.sflag [#allocation7], %s288
        %s290 = sand.u32 %s136, 1
        %s291 = smul.addr %s290, 8
        %s292 = scalar_lea.vmem [#allocation11], %s291
        %p293 = scmp.eq.s32.totalorder %s30, 0
        // Predicated region
        $region45: #{tpu_custom_call.1} parent=31 // pred_check
          %p294 = pneg %p293
        $region46: #{tpu_custom_call.1} parent=31 // pred_check_branch
          %296 = sbr.rel (%p294) target = $region48
        $region47: #{tpu_custom_call.1} parent=31 // pred_region
          %vm297 = vcmask 7168
          %298 = vst.msk [vmem:[#allocation2] sm:$0xff] %vm297, -inf
          %299 = vst.msk [vmem:[#allocation3] sm:$0xff] %vm297, 0.0
          %vm300 = vcmask 261120
          %301 = vst.msk [vmem:[#allocation4] sm:$0xff] %vm300, 0.0
        $region48: #{tpu_custom_call.1} parent=31 // pred_fallthru
          _
        %v302 = vld [vmem:[%s239] sm:$0xff]
        %v303 = vmul.f32 %v302, 0.17677669
        %v304 = vld [vmem:[%s249] sm:$0xff]
        %vm305 = vcmask 261120
        %v307 = vsel %vm305, %v303, 0
        %v310 = vsel %vm305, %v304, 0
        %312 = vmatpush.xpose.msra.mxu0 0.0
        %313 = vmatpush.xpose.msra.mxu0 0.0
        %314 = vmatpush.xpose.msra.mxu0 0.0
        %315 = vmatpush.xpose.msra.mxu0 0.0
        %316 = vmatpush.xpose.msra.mxu0 0.0
        %317 = vmatpush.xpose.msra.mxu0 0.0
        %318 = vmatpush.xpose.msra.mxu0 0.0
        %319 = vmatpush.xpose.msra.mxu0 0.0
        %320 = vmatpush.xpose.msra.mxu0 0.0
        %321 = vmatpush.xpose.msra.mxu0 0.0
        %322 = vmatpush.xpose.msra.mxu0 0.0
        %323 = vmatpush.xpose.msra.mxu0 0.0
        %324 = vmatpush.xpose.msra.mxu0 0.0
        %325 = vmatpush.xpose.msra.mxu0 0.0
        %326 = vmatpush.xpose.msra.mxu0 0.0
        %v327 = vand.u32 %v310, 4294901760
        %328 = vmatpush.xpose.msra.mxu0 %v327
        %v329 = vand.u32 %v307, 4294901760
        %v330 = vsub.f32 %v307, %v329
        %v331 = vand.u32 %v330, 4294901760
        %v332 = vsub.f32 %v330, %v331
        %v333 = vand.u32 %v332, 4294901760
        %334 = vmatmul.f32.gmra.mxu0 %v333
        %v335 = vpop.f32.mrf.mxu0
        %v336 = vadd.f32 0.0, %v335
        %337 = vdwg.mxu0
        %338 = vmatpush.xpose.msra.mxu0 0.0
        %339 = vmatpush.xpose.msra.mxu0 0.0
        %340 = vmatpush.xpose.msra.mxu0 0.0
        %341 = vmatpush.xpose.msra.mxu0 0.0
        %342 = vmatpush.xpose.msra.mxu0 0.0
        %343 = vmatpush.xpose.msra.mxu0 0.0
        %344 = vmatpush.xpose.msra.mxu0 0.0
        %345 = vmatpush.xpose.msra.mxu0 0.0
        %346 = vmatpush.xpose.msra.mxu0 0.0
        %347 = vmatpush.xpose.msra.mxu0 0.0
        %348 = vmatpush.xpose.msra.mxu0 0.0
        %349 = vmatpush.xpose.msra.mxu0 0.0
        %350 = vmatpush.xpose.msra.mxu0 0.0
        %351 = vmatpush.xpose.msra.mxu0 0.0
        %352 = vmatpush.xpose.msra.mxu0 0.0
        %v353 = vand.u32 %v310, 4294901760
        %v354 = vsub.f32 %v310, %v353
        %v355 = vand.u32 %v354, 4294901760
        %v356 = vsub.f32 %v354, %v355
        %v357 = vand.u32 %v356, 4294901760
        %358 = vmatpush.xpose.msra.mxu0 %v357
        %v359 = vand.u32 %v307, 4294901760
        %360 = vmatmul.f32.gmra.mxu0 %v359
        %v361 = vpop.f32.mrf.mxu0
        %v362 = vadd.f32 %v336, %v361
        %363 = vdwg.mxu0
        %364 = vmatpush.xpose.msra.mxu0 0.0
        %365 = vmatpush.xpose.msra.mxu0 0.0
        %366 = vmatpush.xpose.msra.mxu0 0.0
        %367 = vmatpush.xpose.msra.mxu0 0.0
        %368 = vmatpush.xpose.msra.mxu0 0.0
        %369 = vmatpush.xpose.msra.mxu0 0.0
        %370 = vmatpush.xpose.msra.mxu0 0.0
        %371 = vmatpush.xpose.msra.mxu0 0.0
        %372 = vmatpush.xpose.msra.mxu0 0.0
        %373 = vmatpush.xpose.msra.mxu0 0.0
        %374 = vmatpush.xpose.msra.mxu0 0.0
        %375 = vmatpush.xpose.msra.mxu0 0.0
        %376 = vmatpush.xpose.msra.mxu0 0.0
        %377 = vmatpush.xpose.msra.mxu0 0.0
        %378 = vmatpush.xpose.msra.mxu0 0.0
        %v379 = vand.u32 %v310, 4294901760
        %v380 = vsub.f32 %v310, %v379
        %381 = vmatpush.xpose.msra.mxu0 %v380
        %v382 = vand.u32 %v307, 4294901760
        %v383 = vsub.f32 %v307, %v382
        %384 = vmatmul.f32.gmra.mxu0 %v383
        %v385 = vpop.f32.mrf.mxu0
        %v386 = vadd.f32 %v362, %v385
        %387 = vdwg.mxu0
        %388 = vmatpush.xpose.msra.mxu0 0.0
        %389 = vmatpush.xpose.msra.mxu0 0.0
        %390 = vmatpush.xpose.msra.mxu0 0.0
        %391 = vmatpush.xpose.msra.mxu0 0.0
        %392 = vmatpush.xpose.msra.mxu0 0.0
        %393 = vmatpush.xpose.msra.mxu0 0.0
        %394 = vmatpush.xpose.msra.mxu0 0.0
        %395 = vmatpush.xpose.msra.mxu0 0.0
        %396 = vmatpush.xpose.msra.mxu0 0.0
        %397 = vmatpush.xpose.msra.mxu0 0.0
        %398 = vmatpush.xpose.msra.mxu0 0.0
        %399 = vmatpush.xpose.msra.mxu0 0.0
        %400 = vmatpush.xpose.msra.mxu0 0.0
        %401 = vmatpush.xpose.msra.mxu0 0.0
        %402 = vmatpush.xpose.msra.mxu0 0.0
        %v403 = vand.u32 %v310, 4294901760
        %404 = vmatpush.xpose.msra.mxu0 %v403
        %v405 = vand.u32 %v307, 4294901760
        %v406 = vsub.f32 %v307, %v405
        %v407 = vand.u32 %v406, 4294901760
        %408 = vmatmul.f32.gmra.mxu0 %v407
        %v409 = vpop.f32.mrf.mxu0
        %v410 = vadd.f32 %v386, %v409
        %411 = vdwg.mxu0
        %412 = vmatpush.xpose.msra.mxu0 0.0
        %413 = vmatpush.xpose.msra.mxu0 0.0
        %414 = vmatpush.xpose.msra.mxu0 0.0
        %415 = vmatpush.xpose.msra.mxu0 0.0
        %416 = vmatpush.xpose.msra.mxu0 0.0
        %417 = vmatpush.xpose.msra.mxu0 0.0
        %418 = vmatpush.xpose.msra.mxu0 0.0
        %419 = vmatpush.xpose.msra.mxu0 0.0
        %420 = vmatpush.xpose.msra.mxu0 0.0
        %421 = vmatpush.xpose.msra.mxu0 0.0
        %422 = vmatpush.xpose.msra.mxu0 0.0
        %423 = vmatpush.xpose.msra.mxu0 0.0
        %424 = vmatpush.xpose.msra.mxu0 0.0
        %425 = vmatpush.xpose.msra.mxu0 0.0
        %426 = vmatpush.xpose.msra.mxu0 0.0
        %v427 = vand.u32 %v310, 4294901760
        %v428 = vsub.f32 %v310, %v427
        %v429 = vand.u32 %v428, 4294901760
        %430 = vmatpush.xpose.msra.mxu0 %v429
        %v431 = vand.u32 %v307, 4294901760
        %432 = vmatmul.f32.gmra.mxu0 %v431
        %v433 = vpop.f32.mrf.mxu0
        %v434 = vadd.f32 %v410, %v433
        %435 = vdwg.mxu0
        %436 = vmatpush.xpose.msra.mxu0 0.0
        %437 = vmatpush.xpose.msra.mxu0 0.0
        %438 = vmatpush.xpose.msra.mxu0 0.0
        %439 = vmatpush.xpose.msra.mxu0 0.0
        %440 = vmatpush.xpose.msra.mxu0 0.0
        %441 = vmatpush.xpose.msra.mxu0 0.0
        %442 = vmatpush.xpose.msra.mxu0 0.0
        %443 = vmatpush.xpose.msra.mxu0 0.0
        %444 = vmatpush.xpose.msra.mxu0 0.0
        %445 = vmatpush.xpose.msra.mxu0 0.0
        %446 = vmatpush.xpose.msra.mxu0 0.0
        %447 = vmatpush.xpose.msra.mxu0 0.0
        %448 = vmatpush.xpose.msra.mxu0 0.0
        %449 = vmatpush.xpose.msra.mxu0 0.0
        %450 = vmatpush.xpose.msra.mxu0 0.0
        %v451 = vand.u32 %v310, 4294901760
        %452 = vmatpush.xpose.msra.mxu0 %v451
        %v453 = vand.u32 %v307, 4294901760
        %454 = vmatmul.f32.gmra.mxu0 %v453
        %v455 = vpop.f32.mrf.mxu0
        %v456 = vadd.f32 %v434, %v455
        %457 = vdwg.mxu0
        %v458 = vld [vmem:[#allocation2] sm:$0xff]
        %vm459 = vcmask 64512
        %v460 = vsel %vm459, %v456, -inf
        %461 = vmax.xlane.f32.xlu0 %v460
        %v462 = vpop.xlane.xlu0 %461
        %v463 = vmax.f32 %v458, %v462
        %v464 = vsub.f32 %v458, %v463
        %v465 = vmul.f32 %v464, 1.442695
        %v466 = vpow.pop %v465
        %468 = vset.pattern.permute.xlu0 0
        %469 = vperm.xlu0 %468, %v463
        %v470 = vpop.permute.xlu0 %469
        %v472 = vsub.f32 %v456, %v470
        %v473 = vmul.f32 %v472, 1.442695
        %v474 = vpow.pop %v473
        %v475 = vld [vmem:[#allocation3] sm:$0xff]
        %v476 = vmul.f32 %v466, %v475
        %v477 = vsel %vm459, %v474, 0.0
        %478 = vadd.xlane.f32.xlu0 %v477
        %v479 = vpop.xlane.xlu0 %478
        %v480 = vadd.f32 %v476, %v479
        %vm481 = vcmask 7168
        %482 = vst.msk [vmem:[#allocation3] sm:$0xff] %vm481, %v480
        %v483 = vld [vmem:[#allocation4] sm:$0xff]
        %485 = vset.pattern.permute.xlu0 0
        %486 = vperm.xlu0 %485, %v466
        %v487 = vpop.permute.xlu0 %486
        %v489 = vmul.f32 %v487, %v483
        %v490 = vld [vmem:[%s259] sm:$0xff]
        %v492 = vsel %vm459, %v474, 0
        %494 = vmatpush.msra.mxu0 0.0
        %495 = vmatpush.msra.mxu0 0.0
        %496 = vmatpush.msra.mxu0 0.0
        %497 = vmatpush.msra.mxu0 0.0
        %498 = vmatpush.msra.mxu0 0.0
        %499 = vmatpush.msra.mxu0 0.0
        %500 = vmatpush.msra.mxu0 0.0
        %501 = vmatpush.msra.mxu0 0.0
        %502 = vmatpush.msra.mxu0 0.0
        %503 = vmatpush.msra.mxu0 0.0
        %504 = vmatpush.msra.mxu0 0.0
        %505 = vmatpush.msra.mxu0 0.0
        %506 = vmatpush.msra.mxu0 0.0
        %507 = vmatpush.msra.mxu0 0.0
        %508 = vmatpush.msra.mxu0 0.0
        %v509 = vand.u32 %v490, 4294901760
        %510 = vmatpush.msra.mxu0 %v509
        %v511 = vand.u32 %v492, 4294901760
        %v512 = vsub.f32 %v492, %v511
        %v513 = vand.u32 %v512, 4294901760
        %v514 = vsub.f32 %v512, %v513
        %v515 = vand.u32 %v514, 4294901760
        %516 = vmatmul.f32.gmra.mxu0 %v515
        %v517 = vpop.f32.mrf.mxu0
        %v518 = vadd.f32 0.0, %v517
        %519 = vdwg.mxu0
        %520 = vmatpush.msra.mxu0 0.0
        %521 = vmatpush.msra.mxu0 0.0
        %522 = vmatpush.msra.mxu0 0.0
        %523 = vmatpush.msra.mxu0 0.0
        %524 = vmatpush.msra.mxu0 0.0
        %525 = vmatpush.msra.mxu0 0.0
        %526 = vmatpush.msra.mxu0 0.0
        %527 = vmatpush.msra.mxu0 0.0
        %528 = vmatpush.msra.mxu0 0.0
        %529 = vmatpush.msra.mxu0 0.0
        %530 = vmatpush.msra.mxu0 0.0
        %531 = vmatpush.msra.mxu0 0.0
        %532 = vmatpush.msra.mxu0 0.0
        %533 = vmatpush.msra.mxu0 0.0
        %534 = vmatpush.msra.mxu0 0.0
        %v535 = vand.u32 %v490, 4294901760
        %v536 = vsub.f32 %v490, %v535
        %v537 = vand.u32 %v536, 4294901760
        %v538 = vsub.f32 %v536, %v537
        %v539 = vand.u32 %v538, 4294901760
        %540 = vmatpush.msra.mxu0 %v539
        %v541 = vand.u32 %v492, 4294901760
        %542 = vmatmul.f32.gmra.mxu0 %v541
        %v543 = vpop.f32.mrf.mxu0
        %v544 = vadd.f32 %v518, %v543
        %545 = vdwg.mxu0
        %546 = vmatpush.msra.mxu0 0.0
        %547 = vmatpush.msra.mxu0 0.0
        %548 = vmatpush.msra.mxu0 0.0
        %549 = vmatpush.msra.mxu0 0.0
        %550 = vmatpush.msra.mxu0 0.0
        %551 = vmatpush.msra.mxu0 0.0
        %552 = vmatpush.msra.mxu0 0.0
        %553 = vmatpush.msra.mxu0 0.0
        %554 = vmatpush.msra.mxu0 0.0
        %555 = vmatpush.msra.mxu0 0.0
        %556 = vmatpush.msra.mxu0 0.0
        %557 = vmatpush.msra.mxu0 0.0
        %558 = vmatpush.msra.mxu0 0.0
        %559 = vmatpush.msra.mxu0 0.0
        %560 = vmatpush.msra.mxu0 0.0
        %v561 = vand.u32 %v490, 4294901760
        %v562 = vsub.f32 %v490, %v561
        %563 = vmatpush.msra.mxu0 %v562
        %v564 = vand.u32 %v492, 4294901760
        %v565 = vsub.f32 %v492, %v564
        %566 = vmatmul.f32.gmra.mxu0 %v565
        %v567 = vpop.f32.mrf.mxu0
        %v568 = vadd.f32 %v544, %v567
        %569 = vdwg.mxu0
        %570 = vmatpush.msra.mxu0 0.0
        %571 = vmatpush.msra.mxu0 0.0
        %572 = vmatpush.msra.mxu0 0.0
        %573 = vmatpush.msra.mxu0 0.0
        %574 = vmatpush.msra.mxu0 0.0
        %575 = vmatpush.msra.mxu0 0.0
        %576 = vmatpush.msra.mxu0 0.0
        %577 = vmatpush.msra.mxu0 0.0
        %578 = vmatpush.msra.mxu0 0.0
        %579 = vmatpush.msra.mxu0 0.0
        %580 = vmatpush.msra.mxu0 0.0
        %581 = vmatpush.msra.mxu0 0.0
        %582 = vmatpush.msra.mxu0 0.0
        %583 = vmatpush.msra.mxu0 0.0
        %584 = vmatpush.msra.mxu0 0.0
        %v585 = vand.u32 %v490, 4294901760
        %586 = vmatpush.msra.mxu0 %v585
        %v587 = vand.u32 %v492, 4294901760
        %v588 = vsub.f32 %v492, %v587
        %v589 = vand.u32 %v588, 4294901760
        %590 = vmatmul.f32.gmra.mxu0 %v589
        %v591 = vpop.f32.mrf.mxu0
        %v592 = vadd.f32 %v568, %v591
        %593 = vdwg.mxu0
        %594 = vmatpush.msra.mxu0 0.0
        %595 = vmatpush.msra.mxu0 0.0
        %596 = vmatpush.msra.mxu0 0.0
        %597 = vmatpush.msra.mxu0 0.0
        %598 = vmatpush.msra.mxu0 0.0
        %599 = vmatpush.msra.mxu0 0.0
        %600 = vmatpush.msra.mxu0 0.0
        %601 = vmatpush.msra.mxu0 0.0
        %602 = vmatpush.msra.mxu0 0.0
        %603 = vmatpush.msra.mxu0 0.0
        %604 = vmatpush.msra.mxu0 0.0
        %605 = vmatpush.msra.mxu0 0.0
        %606 = vmatpush.msra.mxu0 0.0
        %607 = vmatpush.msra.mxu0 0.0
        %608 = vmatpush.msra.mxu0 0.0
        %v609 = vand.u32 %v490, 4294901760
        %v610 = vsub.f32 %v490, %v609
        %v611 = vand.u32 %v610, 4294901760
        %612 = vmatpush.msra.mxu0 %v611
        %v613 = vand.u32 %v492, 4294901760
        %614 = vmatmul.f32.gmra.mxu0 %v613
        %v615 = vpop.f32.mrf.mxu0
        %v616 = vadd.f32 %v592, %v615
        %617 = vdwg.mxu0
        %618 = vmatpush.msra.mxu0 0.0
        %619 = vmatpush.msra.mxu0 0.0
        %620 = vmatpush.msra.mxu0 0.0
        %621 = vmatpush.msra.mxu0 0.0
        %622 = vmatpush.msra.mxu0 0.0
        %623 = vmatpush.msra.mxu0 0.0
        %624 = vmatpush.msra.mxu0 0.0
        %625 = vmatpush.msra.mxu0 0.0
        %626 = vmatpush.msra.mxu0 0.0
        %627 = vmatpush.msra.mxu0 0.0
        %628 = vmatpush.msra.mxu0 0.0
        %629 = vmatpush.msra.mxu0 0.0
        %630 = vmatpush.msra.mxu0 0.0
        %631 = vmatpush.msra.mxu0 0.0
        %632 = vmatpush.msra.mxu0 0.0
        %v633 = vand.u32 %v490, 4294901760
        %634 = vmatpush.msra.mxu0 %v633
        %v635 = vand.u32 %v492, 4294901760
        %636 = vmatmul.f32.gmra.mxu0 %v635
        %v637 = vpop.f32.mrf.mxu0
        %v638 = vadd.f32 %v616, %v637
        %639 = vdwg.mxu0
        %v640 = vadd.f32 %v489, %v638
        %641 = vst.msk [vmem:[#allocation4] sm:$0xff] %vm305, %v640
        %642 = vst.msk [vmem:[#allocation2] sm:$0xff] %vm481, %v463
        // Predicated region
        $region49: #{tpu_custom_call.1} parent=31 // pred_check
          %p643 = pneg %p293
        $region50: #{tpu_custom_call.1} parent=31 // pred_check_branch
          %645 = sbr.rel (%p643) target = $region52
        $region51: #{tpu_custom_call.1} parent=31 // pred_region
          %v646 = vld [vmem:[#allocation3] sm:$0xff]
          %v647 = vrcp.pop %v646
          %v648 = vmul.f32 %v646, %v647
          %v649 = vsub.f32 1.0, %v648
          %v650 = vmul.f32 %v647, %v649
          %v651 = vadd.f32 %v647, %v650
          %vm652 = vweird.f32 %v646
          %vm653 = vweird.f32 %v647
          %vm654 = vmor %vm652, %vm653
          %v655 = vsel %vm654, %v647, %v651
          %v656 = vand.u32 2147483647, %v646
          %vm657 = vcmp.eq.f32.partialorder %v656, 8.507059e+37
          %v658 = vand.u32 %v646, 2147483648
          %v659 = vor.u32 1.1754944e-38, %v658
          %v660 = vsel %vm657, %v659, %v655
          %v661 = vmul.f32 1.0, %v660
          %v662 = vld [vmem:[#allocation4] sm:$0xff]
          %664 = vset.pattern.permute.xlu0 0
          %665 = vperm.xlu0 %664, %v661
          %v666 = vpop.permute.xlu0 %665
          %v668 = vmul.f32 %v662, %v666
          %669 = vst.msk [vmem:[%s292] sm:$0xff] %vm305, %v668
        $region52: #{tpu_custom_call.1} parent=31 // pred_fallthru
          _
        %s670 = sand.u32 %s136, 1
        %s671 = scalar_lea.sflag [#allocation7], %s670
        %s672 = sand.u32 %s136, 1
        %s673 = smul.addr %s672, 8
        %s674 = scalar_lea.vmem [#allocation11], %s673
        // Predicated region
        $region53: #{tpu_custom_call.1} parent=31 // pred_check
          %p675 = pneg %p146
        $region54: #{tpu_custom_call.1} parent=31 // pred_check_branch
          %677 = sbr.rel (%p675) target = $region56
        $region55: #{tpu_custom_call.1} parent=31 // pred_region
          %679 = vsyncadd %s671, 0
          %s680 = sadd.s32 %s29, %s28
          %s681 = smul.addr %s680, 8
          %s682 = scalar_lea.hbm %s3, %s681
          %s684 = sshll.u32 %s674, 4
          %s685 = int_to_ptr.vmem [resolvable:$true] %s684
          %s686 = sshll.u32 %s682, 4
          %s687 = int_to_ptr.hbm [resolvable:$true] %s686
          %689 = dma.vmem_to_hbm [thread:$0]  %s685, 128, %s687, %s671
        $region56: #{tpu_custom_call.1} parent=31 // pred_fallthru
          _
      $region32: #{tpu_custom_call.1} parent=5 // pred_fallthru
        _
      %p690 = scmp.le.s32.totalorder 2, %s18
      // Predicated region
      $region57: #{tpu_custom_call.1} parent=5 // pred_check
        %p691 = pneg %p690
      $region58: #{tpu_custom_call.1} parent=5 // pred_check_branch
        %693 = sbr.rel (%p691) target = $region60
      $region59: #{tpu_custom_call.1} parent=5 // pred_region
        %s694 = ssub.s32 %s18, 2
        // Predicated region
        $region61: #{tpu_custom_call.1} parent=59 // pred_check
          %p695 = pneg %p152
        $region62: #{tpu_custom_call.1} parent=59 // pred_check_branch
          %697 = sbr.rel (%p695) target = $region64
        $region63: #{tpu_custom_call.1} parent=59 // pred_region
          %s698 = sand.u32 %s137, 1
          %s699 = scalar_lea.sflag [#allocation7], %s698
          %s700 = sand.u32 %s137, 1
          %s701 = smul.addr %s700, 8
          %s702 = scalar_lea.vmem [#allocation11], %s701
          %704 = dma.done %s699, 128
        $region64: #{tpu_custom_call.1} parent=59 // pred_fallthru
          _
      $region60: #{tpu_custom_call.1} parent=5 // pred_fallthru
        _
    $region6: #{tpu_custom_call.1} parent=1 // loop_footer
      %s22 = sadd.s32 1, %s18
    $region7: #{tpu_custom_call.1} parent=1 // loop_footer_branch
      %17 = sbr.rel target = $region3
    $region8: #{tpu_custom_call.1} parent=1 // loop_exit
      _
    %705 = vsyncpa [#allocation6], 1
    %s706 = scalar_lea.sflag [#allocation6], 1
    %707 = vsyncpa %s706, 1
    %708 = vsyncpa [#allocation9], 1
    %s709 = scalar_lea.sflag [#allocation9], 1
    %710 = vsyncpa %s709, 1
    %711 = vsyncpa [#allocation7], 1
    %s712 = scalar_lea.sflag [#allocation7], 1
    %713 = vsyncpa %s712, 1

</llo_original>
